<compile_context>
chip_gen: v6e
topology: v6e:2x2x1
jax: 0.10.0
libtpu: 0.0.40
codegen_flags: <defaults>
</compile_context>

<pallas_src>
import jax
import jax.numpy as jnp
from jax.experimental import pallas as pl
from jax.experimental.pallas import tpu as pltpu

NUM_ITEM = 8    # nn.Linear(num_item, num_item)
BATCH = 16

_LANE = 128     # lane width (last dim of a vreg)
_SUBLANE = 8    # f32 sublane packing (second-to-last dim)
_NEG = -1e30    # bias for padded output columns -> softmax prob == 0


def _round_up(x, m):
    return (x + m - 1) // m * m


def linear_softmax_kernel(x_ref, w_ref, b_ref, o_ref):
    # x_ref: (tm, K)      activation tile (bf16 or f32)
    # w_ref: (K, n_pad)   pre-transposed weight, lane-dense output axis
    # b_ref: (1, n_pad)   f32 bias row; padded columns hold -1e30
    # o_ref: (tm, n_pad)  f32 softmax output tile
    logits = jnp.dot(x_ref[...], w_ref[...], preferred_element_type=jnp.float32)
    logits = logits + b_ref[...]              # (1, n_pad) broadcast, VPU

    # Row softmax in f32. Padded columns: exp(-1e30 - m) underflows to 0, so the
    # normalization only sees the real num_item columns.
    m = jnp.max(logits, axis=-1, keepdims=True)
    p = jnp.exp(logits - m)
    denom = jnp.sum(p, axis=-1, keepdims=True)
    inv = pl.reciprocal(denom, approx=True)   # EUP (otherwise idle after exp)
    inv = inv * (2.0 - denom * inv)           # one Newton step -> ~f32-exact
    o_ref[...] = (p * inv).astype(o_ref.dtype)


def surrogate_regression_forward(x, weight, bias, *, tm=None,
                                 matmul_dtype=jnp.bfloat16):
    """Pallas forward for SurrogateRegression: softmax(x @ W.T + b, axis=1)."""
    B, F = x.shape
    N, Fw = weight.shape
    assert F == Fw, "nn.Linear(num_item, num_item): in/out features must match x"

    # ---- Tile choices: batch-only padding; K stays == num_item (no 128 pad) ----
    b_pad = _round_up(B, _SUBLANE)
    if tm is None:
        tm = b_pad if b_pad <= 512 else 512   # single grid step at small sizes
    tm = _round_up(tm, _SUBLANE)
    b_pad = _round_up(b_pad, tm)
    n_pad = _round_up(N, _LANE)               # lane-dense output (full vst)

    # ---- Host-side prep (tiny one-time XLA ops, no full activation copy) ----
    x_in = x.astype(matmul_dtype)
    if b_pad != B:
        x_in = jnp.pad(x_in, ((0, b_pad - B), (0, 0)))

    # Pre-transposed (K, n_pad) weight so the kernel matmul is (M,K)x(K,N).
    w_t = (
        jnp.zeros((F, n_pad), matmul_dtype)
        .at[:, :N].set(weight.T.astype(matmul_dtype))
    )

    # Bias stays f32 (the -1e30 sentinel must not go through narrow dtypes).
    bias_row = (
        jnp.full((1, n_pad), _NEG, jnp.float32)
        .at[0, :N].set(bias.astype(jnp.float32))
    )

    out = pl.pallas_call(
        linear_softmax_kernel,
        out_shape=jax.ShapeDtypeStruct((b_pad, n_pad), jnp.float32),
        grid=(b_pad // tm,),
        in_specs=[
            pl.BlockSpec((tm, F), lambda i: (i, 0)),              # x tile per batch step
            pl.BlockSpec((F, n_pad), lambda i: (0, 0),
                         pipeline_mode=pl.Buffered(1)),           # grid-invariant weight
            pl.BlockSpec((1, n_pad), lambda i: (0, 0),
                         pipeline_mode=pl.Buffered(1)),           # grid-invariant bias
        ],
        out_specs=pl.BlockSpec((tm, n_pad), lambda i: (i, 0)),    # lane-dense output
        compiler_params=pltpu.CompilerParams(
            dimension_semantics=("parallel",),                    # batch tiles -> 2 TCs on v7x
            vmem_limit_bytes=32 * 1024 * 1024,
        ),
    )(x_in, w_t, bias_row)

    return out[:B, :N]


if __name__ == "__main__":
    key = jax.random.PRNGKey(0)
    kx, kw, kb = jax.random.split(key, 3)

    # Deterministic init mirroring nn.Linear default: U(-1/sqrt(fan_in), 1/sqrt(fan_in)).
    bound = 1.0 / jnp.sqrt(jnp.float32(NUM_ITEM))
    weight = jax.random.uniform(
        kw, (NUM_ITEM, NUM_ITEM), dtype=jnp.float32, minval=-bound, maxval=bound
    )
    bias = jax.random.uniform(
        kb, (NUM_ITEM,), dtype=jnp.float32, minval=-bound, maxval=bound
    )
    x = jax.random.normal(kx, (BATCH, NUM_ITEM), dtype=jnp.float32)

    # Reference: softmax(linear(x), dim=1), matching the PyTorch module.
    ref = jax.nn.softmax(x @ weight.T + bias, axis=1)

    # f32 matmul-input path: tight match against the reference.
    out_f32 = jax.block_until_ready(
        surrogate_regression_forward(x, weight, bias, matmul_dtype=jnp.float32)
    )
    assert out_f32.shape == (BATCH, NUM_ITEM)
    assert jnp.allclose(out_f32, ref, atol=1e-5, rtol=1e-5)
    assert jnp.allclose(out_f32.sum(axis=1), 1.0, atol=1e-5)

    # Default bf16 matmul-input path (v6e/v7x MXU + bandwidth win); softmax is f32.
    out_bf16 = jax.block_until_ready(surrogate_regression_forward(x, weight, bias))
    assert out_bf16.shape == (BATCH, NUM_ITEM)
    assert jnp.allclose(out_bf16, ref, atol=2e-2, rtol=2e-2)
    assert jnp.allclose(out_bf16.sum(axis=1), 1.0, atol=1e-3)

    print("KERNEL_OK")
</pallas_src>

<mosaic_0001>
module attributes {stable_mosaic.version = 11 : i64} {
  func.func @linear_softmax_kernel(%arg0: i32, %arg1: memref<16x8xf32, #tpu.memory_space<vmem>>, %arg2: memref<8x128xf32, #tpu.memory_space<vmem>>, %arg3: memref<1x128xf32, #tpu.memory_space<vmem>>, %arg4: memref<16x128xf32, #tpu.memory_space<vmem>>) attributes {dimension_semantics = [#tpu.dimension_semantics<parallel>], iteration_bounds = array<i64: 1>, scalar_prefetch = 0 : i64, scratch_operands = 0 : i64, tpu.core_type = #tpu.core_type<tc>, window_params = [{transform_indices = @transform_0, window_bounds = array<i64: 16, 8>}, {pipeline_mode = #tpu.pipeline_mode<synchronous>, transform_indices = @transform_1, window_bounds = array<i64: 8, 128>}, {pipeline_mode = #tpu.pipeline_mode<synchronous>, transform_indices = @transform_2, window_bounds = array<i64: 1, 128>}, {transform_indices = @transform_3, window_bounds = array<i64: 16, 128>}]} {
    %c0 = arith.constant 0 : index
    %c0_0 = arith.constant 0 : index
    %0 = vector.load %arg1[%c0, %c0_0] : memref<16x8xf32, #tpu.memory_space<vmem>>, vector<16x8xf32>
    %c0_1 = arith.constant 0 : index
    %c0_2 = arith.constant 0 : index
    %1 = vector.load %arg2[%c0_1, %c0_2] : memref<8x128xf32, #tpu.memory_space<vmem>>, vector<8x128xf32>
    %cst = arith.constant dense<0.000000e+00> : vector<16x128xf32>
    %2 = tpu.matmul %0, %1, %cst {dimension_numbers = #tpu.dot_dimension_numbers<[1], [0], [0], [1], [0, 0, 1, 1], [], []>} : vector<16x8xf32>, vector<8x128xf32>, vector<16x128xf32> -> vector<16x128xf32>
    %c0_3 = arith.constant 0 : index
    %c0_4 = arith.constant 0 : index
    %3 = vector.load %arg3[%c0_3, %c0_4] : memref<1x128xf32, #tpu.memory_space<vmem>>, vector<1x128xf32>
    %4 = vector.broadcast %3 : vector<1x128xf32> to vector<16x128xf32>
    %5 = arith.addf %2, %4 : vector<16x128xf32>
    %cst_5 = arith.constant dense<0xFF800000> : vector<16xf32>
    %6 = vector.multi_reduction <maximumf>, %5, %cst_5 [1] : vector<16x128xf32> to vector<16xf32>
    %7 = vector.shape_cast %6 : vector<16xf32> to vector<16x1xf32>
    %8 = vector.broadcast %7 : vector<16x1xf32> to vector<16x128xf32>
    %9 = arith.subf %5, %8 : vector<16x128xf32>
    %10 = math.exp %9 : vector<16x128xf32>
    %cst_6 = arith.constant dense<0.000000e+00> : vector<16xf32>
    %11 = vector.multi_reduction <add>, %10, %cst_6 [1] : vector<16x128xf32> to vector<16xf32>
    %12 = vector.shape_cast %11 : vector<16xf32> to vector<16x1xf32>
    %13 = tpu.reciprocal %12 {approx = true} : vector<16x1xf32> -> vector<16x1xf32>
    %14 = arith.mulf %12, %13 : vector<16x1xf32>
    %cst_7 = arith.constant 2.000000e+00 : f32
    %15 = vector.broadcast %cst_7 : f32 to vector<16x1xf32>
    %16 = arith.subf %15, %14 : vector<16x1xf32>
    %17 = arith.mulf %13, %16 : vector<16x1xf32>
    %18 = vector.broadcast %17 : vector<16x1xf32> to vector<16x128xf32>
    %19 = arith.mulf %10, %18 : vector<16x128xf32>
    %c0_8 = arith.constant 0 : index
    %c0_9 = arith.constant 0 : index
    %20 = vector.load %arg4[%c0_8, %c0_9] : memref<16x128xf32, #tpu.memory_space<vmem>>, vector<16x128xf32>
    tpu.vector_store %arg4[%c0_8, %c0_9], %19 {strides = array<i32>} : memref<16x128xf32, #tpu.memory_space<vmem>>, vector<16x128xf32>,
    return
  }
  func.func @transform_0(%arg0: i32) -> (i32, i32) {
    %c0_i32 = arith.constant 0 : i32
    %c0_i32_0 = arith.constant 0 : i32
    return %arg0, %c0_i32 : i32, i32
  }
  func.func @transform_1(%arg0: i32) -> (i32, i32) {
    %c0_i32 = arith.constant 0 : i32
    %c0_i32_0 = arith.constant 0 : i32
    %c0_i32_1 = arith.constant 0 : i32
    return %c0_i32, %c0_i32_0 : i32, i32
  }
  func.func @transform_2(%arg0: i32) -> (i32, i32) {
    %c0_i32 = arith.constant 0 : i32
    %c0_i32_0 = arith.constant 0 : i32
    %c0_i32_1 = arith.constant 0 : i32
    return %c0_i32, %c0_i32_0 : i32, i32
  }
  func.func @transform_3(%arg0: i32) -> (i32, i32) {
    %c0_i32 = arith.constant 0 : i32
    %c0_i32_0 = arith.constant 0 : i32
    return %arg0, %c0_i32 : i32, i32
  }
}

</mosaic_0001>

<llo_original>
// kernel: tpu_custom_call.1
$region0: #{tpu_custom_call.1}
  #allocation0 [shape = 'u32[]', space=smem, size = 0x4, offset = 0x4, fixed_abs, tag = 'smem constant byte address 0x4 - core index']
  #allocation1 [shape = 'u32[144,128]{1,0:T(1,128)}', space=vmem, size = 0x12000, scoped, tag = 'internal scratch']
  %s0 = inlined_call_operand.vmem [shape: f32[16,8], index: 0, kind: input, shape index: {}]
  %s1 = inlined_call_operand.vmem [shape: f32[8,128], index: 1, kind: input, shape index: {}]
  %s2 = inlined_call_operand.vmem [shape: f32[1,128], index: 2, kind: input, shape index: {}]
  %s3 = inlined_call_operand.hbm [shape: f32[16,128], index: 3, kind: output, shape index: {}]
  %s4 = sld [smem:[#allocation0]]
  $region22: #{tpu_custom_call.1} parent=0
    _
  %s6 = ssub.s32 1, %s4
  %s7 = scalar_select 0, %s6, %s4
  $region1: #{tpu_custom_call.1} parent=0
    #allocation2 [shape = 'u8[8192]{0}', space=vmem, size = 0x2000, scoped, tag = 'output window, operand 0, single buffered']
    #allocation3 [shape = 's32[1]{0}', space=sflag, size = 0x4, scoped, tag = 'scoped memory for tpu_custom_call.1']
    %8 = vsyncpa [#allocation3], 0
    // Predicated region
    $region2: #{tpu_custom_call.1} parent=1 // pred_check
      _
    $region3: #{tpu_custom_call.1} parent=1 // pred_check_branch
      %10 = sbr.rel (0) target = $region5
    $region4: #{tpu_custom_call.1} parent=1 // pred_region
      _
    $region5: #{tpu_custom_call.1} parent=1 // pred_fallthru
      _
    // Predicated region
    $region6: #{tpu_custom_call.1} parent=1 // pred_check
      _
    $region7: #{tpu_custom_call.1} parent=1 // pred_check_branch
      %12 = sbr.rel (0) target = $region9
    $region8: #{tpu_custom_call.1} parent=1 // pred_region
      _
    $region9: #{tpu_custom_call.1} parent=1 // pred_fallthru
      _
    // Predicated region
    $region10: #{tpu_custom_call.1} parent=1 // pred_check
      _
    $region11: #{tpu_custom_call.1} parent=1 // pred_check_branch
      %14 = sbr.rel (0) target = $region13
    $region12: #{tpu_custom_call.1} parent=1 // pred_region
      _
    $region13: #{tpu_custom_call.1} parent=1 // pred_fallthru
      _
    %v15 = vld [vmem:[%s0] sm:$0xff]
    %v16 = vld [vmem:[%s0 + $0x8] sm:$0xff]
    %v17 = vld [vmem:[%s1] sm:$0xff]
    %v18 = vld [vmem:[%s2] sm:$0x1]
    %v20 = vlaneseq
    %v21 = vshrl.u32 %v20, 7
    %v22 = vsub.s32 0, %v21
    %v23 = vrot.slane %v18, %v22
    %vm25 = vcmask 64512
    %v27 = vsel %vm25, %v15, 0
    %v30 = vsel %vm25, %v16, 0
    %32 = vmatprep.subr.mxu0 0.0
    %33 = vmatpush1.msra.mxu0 0.0
    %34 = vmatprep.subr.mxu0 0.0
    %35 = vmatpush1.msra.mxu0 0.0
    %36 = vmatprep.subr.mxu0 0.0
    %37 = vmatpush1.msra.mxu0 0.0
    %38 = vmatprep.subr.mxu0 0.0
    %39 = vmatpush1.msra.mxu0 0.0
    %40 = vmatprep.subr.mxu0 0.0
    %41 = vmatpush1.msra.mxu0 0.0
    %42 = vmatprep.subr.mxu0 0.0
    %43 = vmatpush1.msra.mxu0 0.0
    %44 = vmatprep.subr.mxu0 0.0
    %45 = vmatpush1.msra.mxu0 0.0
    %46 = vmatprep.subr.mxu0 0.0
    %47 = vmatpush1.msra.mxu0 0.0
    %48 = vmatprep.subr.mxu0 0.0
    %49 = vmatpush1.msra.mxu0 0.0
    %50 = vmatprep.subr.mxu0 0.0
    %51 = vmatpush1.msra.mxu0 0.0
    %52 = vmatprep.subr.mxu0 0.0
    %53 = vmatpush1.msra.mxu0 0.0
    %54 = vmatprep.subr.mxu0 0.0
    %55 = vmatpush1.msra.mxu0 0.0
    %56 = vmatprep.subr.mxu0 0.0
    %57 = vmatpush1.msra.mxu0 0.0
    %58 = vmatprep.subr.mxu0 0.0
    %59 = vmatpush1.msra.mxu0 0.0
    %60 = vmatprep.subr.mxu0 0.0
    %61 = vmatpush1.msra.mxu0 0.0
    %62 = vmatprep.subr.mxu0 0.0
    %63 = vmatpush1.msra.mxu0 %v17
    %64 = vmatprep.subr.mxu0 0.0
    %65 = vmatpush2.msra.mxu0 0.0
    %66 = vmatprep.subr.mxu0 0.0
    %67 = vmatpush2.msra.mxu0 0.0
    %68 = vmatprep.subr.mxu0 0.0
    %69 = vmatpush2.msra.mxu0 0.0
    %70 = vmatprep.subr.mxu0 0.0
    %71 = vmatpush2.msra.mxu0 0.0
    %72 = vmatprep.subr.mxu0 0.0
    %73 = vmatpush2.msra.mxu0 0.0
    %74 = vmatprep.subr.mxu0 0.0
    %75 = vmatpush2.msra.mxu0 0.0
    %76 = vmatprep.subr.mxu0 0.0
    %77 = vmatpush2.msra.mxu0 0.0
    %78 = vmatprep.subr.mxu0 0.0
    %79 = vmatpush2.msra.mxu0 0.0
    %80 = vmatprep.subr.mxu0 0.0
    %81 = vmatpush2.msra.mxu0 0.0
    %82 = vmatprep.subr.mxu0 0.0
    %83 = vmatpush2.msra.mxu0 0.0
    %84 = vmatprep.subr.mxu0 0.0
    %85 = vmatpush2.msra.mxu0 0.0
    %86 = vmatprep.subr.mxu0 0.0
    %87 = vmatpush2.msra.mxu0 0.0
    %88 = vmatprep.subr.mxu0 0.0
    %89 = vmatpush2.msra.mxu0 0.0
    %90 = vmatprep.subr.mxu0 0.0
    %91 = vmatpush2.msra.mxu0 0.0
    %92 = vmatprep.subr.mxu0 0.0
    %93 = vmatpush2.msra.mxu0 0.0
    %94 = vmatprep.subr.mxu0 0.0
    %95 = vmatpush2.msra.mxu0 0.0
    %96 = vmatprep.mubr.f32.mxu0 0.0
    %97 = vmatmul.mubr.f32.gmra.mxu0 %v27
    %v98 = vpop.f32.mrf.mxu0
    %v99 = vadd.f32 %v23, %v98
    %v100 = vpop.f32.mrf.mxu0
    %101 = vmatprep.mubr.f32.mxu0 0.0
    %102 = vmatmul.mubr.f32.gmra.mxu0 %v30
    %v103 = vpop.f32.mrf.mxu0
    %v104 = vadd.f32 %v23, %v103
    %v105 = vpop.f32.mrf.mxu0
    %106 = vdwg.mxu0
    %107 = vmax.xlane.f32.xlu0 %v99
    %v108 = vpop.xlane.xlu0 %107
    %109 = vmax.xlane.f32.xlu0 %v104
    %v110 = vpop.xlane.xlu0 %109
    %v111 = vsub.f32 %v99, %v108
    %v112 = vsub.f32 %v104, %v110
    %v113 = vmul.f32 %v111, 1.442695
    %v114 = vpow.pop %v113
    %v115 = vmul.f32 %v112, 1.442695
    %v116 = vpow.pop %v115
    %117 = vadd.xlane.f32.xlu0 %v114
    %v118 = vpop.xlane.xlu0 %117
    %119 = vadd.xlane.f32.xlu0 %v116
    %v120 = vpop.xlane.xlu0 %119
    %v121 = vrcp.pop %v118
    %v122 = vrcp.pop %v120
    %v123 = vmul.f32 %v118, %v121
    %v124 = vmul.f32 %v120, %v122
    %v125 = vsub.f32 2.0, %v123
    %v126 = vsub.f32 2.0, %v124
    %v127 = vmul.f32 %v121, %v125
    %v128 = vmul.f32 %v122, %v126
    %v129 = vmul.f32 %v114, %v127
    %v130 = vmul.f32 %v116, %v128
    %131 = vst [vmem:[#allocation2] sm:$0xff] %v129
    %132 = vst [vmem:[#allocation2 + $0x8] sm:$0xff] %v130
    // Predicated region
    $region14: #{tpu_custom_call.1} parent=1 // pred_check
      _
    $region15: #{tpu_custom_call.1} parent=1 // pred_check_branch
      %134 = sbr.rel (0) target = $region17
    $region16: #{tpu_custom_call.1} parent=1 // pred_region
      %s136 = ssub.s32 256, 256
      %137 = vsyncadd [#allocation3], %s136
      %s138 = sshll.u32 [#allocation2], 4
      %s139 = int_to_ptr.vmem [resolvable:$true] %s138
      %144 = dma.vmem_to_hbm [thread:$0]  %s139, 256, %s3, [#allocation3], 128, 128, 8
    $region17: #{tpu_custom_call.1} parent=1 // pred_fallthru
      _
    // Predicated region
    $region18: #{tpu_custom_call.1} parent=1 // pred_check
      _
    $region19: #{tpu_custom_call.1} parent=1 // pred_check_branch
      %146 = sbr.rel (0) target = $region21
    $region20: #{tpu_custom_call.1} parent=1 // pred_region
      %147 = dma.done [#allocation3], 256
    $region21: #{tpu_custom_call.1} parent=1 // pred_fallthru
      _
    %148 = vsyncpa [#allocation3], 1

</llo_original>
